<compile_context>
chip_gen: v7x
topology: tpu7x:2x2x1
jax: 0.10.0
libtpu: 0.0.40
codegen_flags: <defaults>
</compile_context>

<pallas_src>
import functools

import jax
import jax.numpy as jnp
from jax.experimental import pallas as pl
from jax.experimental.pallas import tpu as pltpu


def _cdiv(a: int, b: int) -> int:
    return -(-a // b)


def _round_up(x: int, m: int) -> int:
    return ((x + m - 1) // m) * m


@functools.partial(jax.jit, static_argnames=("dims", "max_tile_b", "min_split_b"))
def fused_body_forward(x1, x2, w_all, b_all, *, dims,
                       max_tile_b: int = 2048, min_split_b: int = 512):
    """Whole Body forward as a single pallas_call, gridded over the batch."""
    d_obs, d_act, h1_dim, h2_dim, d_out, slab_w = dims
    batch = x1.shape[0]
    assert x1.shape[1] == d_obs and x2.shape[1] == d_act

    # Row offsets inside the packed weight slab: [w1 | w2_obs | w3 | w2_act].
    r1 = d_obs
    r2 = r1 + h1_dim
    r3 = r2 + h2_dim
    r4 = r3 + d_act
    assert w_all.shape == (r4, slab_w)
    assert b_all.shape == (3, slab_w)

    # ---- balanced batch tiling (feedback #1/#2/#6) ----
    num_tiles = _cdiv(batch, max_tile_b)
    if num_tiles == 1 and batch >= 2 * min_split_b:
        num_tiles = 2                       # let v7x megacore use both TCs
    if num_tiles > 1:
        num_tiles = _round_up(num_tiles, 2)  # even split across 2 TCs
    tile_b = _round_up(_cdiv(batch, num_tiles), 8)   # sublane multiple
    b_pad = tile_b * num_tiles
    if b_pad != batch:
        x1 = jnp.pad(x1, ((0, b_pad - batch), (0, 0)))
        x2 = jnp.pad(x2, ((0, b_pad - batch), (0, 0)))

    def kernel(x1_ref, x2_ref, w_ref, b_ref, o_ref):
        # bf16 MXU operands (cast in-kernel), f32 accumulate, f32 epilogue.
        x1b = x1_ref[...].astype(jnp.bfloat16)            # (tB, d_obs)
        x2b = x2_ref[...].astype(jnp.bfloat16)            # (tB, d_act)
        w = w_ref[...]                                     # (r4, slab_w) f32
        b = b_ref[...]                                     # (3, slab_w)  f32

        w1 = w[0:r1, :h1_dim].astype(jnp.bfloat16)         # (d_obs, H1)
        w2o = w[r1:r2, :h2_dim].astype(jnp.bfloat16)       # (H1, H2)
        w3 = w[r2:r3, :d_out].astype(jnp.bfloat16)         # (H2, Dout)
        w2a = w[r3:r4, :h2_dim].astype(jnp.bfloat16)       # (d_act, H2)

        h1 = jnp.dot(x1b, w1, preferred_element_type=jnp.float32)
        h1 = jnp.maximum(h1 + b[0:1, :h1_dim], 0.0)

        h2 = jnp.dot(h1.astype(jnp.bfloat16), w2o,
                     preferred_element_type=jnp.float32)
        h2 = h2 + jnp.dot(x2b, w2a, preferred_element_type=jnp.float32)
        h2 = jnp.maximum(h2 + b[1:2, :h2_dim], 0.0)

        h3 = jnp.dot(h2.astype(jnp.bfloat16), w3,
                     preferred_element_type=jnp.float32)
        h3 = jnp.maximum(h3 + b[2:3, :d_out], 0.0)

        o_ref[...] = h3.astype(o_ref.dtype)

    batch_map = lambda i: (i, 0)    # activation tiles move along the batch
    whole_map = lambda i: (0, 0)    # weight/bias slabs: whole-array VMEM residents

    out = pl.pallas_call(
        kernel,
        out_shape=jax.ShapeDtypeStruct((b_pad, d_out), jnp.float32),
        grid=(num_tiles,),
        in_specs=[
            pl.BlockSpec((tile_b, d_obs), batch_map),
            pl.BlockSpec((tile_b, d_act), batch_map),
            pl.BlockSpec((r4, slab_w), whole_map),
            pl.BlockSpec((3, slab_w), whole_map),
        ],
        out_specs=pl.BlockSpec((tile_b, d_out), batch_map),
        compiler_params=pltpu.CompilerParams(
            dimension_semantics=("parallel",)),
    )(x1, x2, w_all, b_all)

    return out if b_pad == batch else out[:batch]


class Body:
    """JAX/Pallas mirror of yadrl.networks.body.Body forward()."""

    def __init__(self, primary: int, secondary: int, layer_dims, action_layer: int,
                 key: jax.Array):
        assert len(layer_dims) == 3 and action_layer == 1, \
            "fused kernel implements the representative 3-layer / action_layer=1 config"
        self.action_layer = action_layer
        self.output_dim = layer_dims[-1]
        h1_dim, h2_dim, d_out = layer_dims
        slab_w = max(h1_dim, h2_dim, d_out)

        # Build full (concat-style) params first — identical init to the torch
        # module's layout — then split the action-layer weight row-wise.
        self.full_params = []
        in_dim = primary
        for i, out_dim in enumerate(layer_dims):
            if i == action_layer:
                in_dim += secondary
            key, wk, bk = jax.random.split(key, 3)
            w = jax.random.normal(wk, (in_dim, out_dim), jnp.float32) * (
                2.0 / in_dim) ** 0.5
            b = jax.random.normal(bk, (1, out_dim), jnp.float32) * 0.01
            self.full_params.append((w, b))
            in_dim = out_dim

        (w1, b1), (w2, b2), (w3, b3) = self.full_params
        # cat order in forward is (x_1, x_2): first h1_dim rows -> obs, rest -> act.
        w2_obs, w2_act = w2[:h1_dim], w2[h1_dim:]

        def pad_cols(a, width):
            return jnp.pad(a, ((0, 0), (0, width - a.shape[1])))

        # One packed weight slab + one packed bias slab (feedback #7).
        self.w_all = jnp.concatenate(
            [pad_cols(w1, slab_w), pad_cols(w2_obs, slab_w),
             pad_cols(w3, slab_w), pad_cols(w2_act, slab_w)], axis=0)
        self.b_all = jnp.concatenate(
            [pad_cols(b1, slab_w), pad_cols(b2, slab_w),
             pad_cols(b3, slab_w)], axis=0)

        self._dims = (primary, secondary, h1_dim, h2_dim, d_out, slab_w)

    def __call__(self, x_1: jax.Array, x_2: jax.Array) -> jax.Array:
        return fused_body_forward(x_1, x_2, self.w_all, self.b_all,
                                  dims=self._dims)

    # TODO(synk): sample_noise / reset_noise (NoisyLinear) not modeled — layers
    # here are plain linear+ReLU, so these are no-ops.
    def sample_noise(self):
        pass

    def reset_noise(self):
        pass


def _ref_forward_f32(x1, x2, params, action_layer):
    """Pure-JAX f32 reference of the original (concat-based) forward."""
    h = x1
    for i, (w, b) in enumerate(params):
        if i == action_layer:
            h = jnp.concatenate((h, x2), axis=1)
        h = jnp.maximum(h @ w + b, 0.0)
    return h


def _ref_forward_bf16(x1, x2, params, action_layer):
    """Reference with the same bf16-operand / f32-accumulate pattern as the kernel."""
    h = x1
    for i, (w, b) in enumerate(params):
        if i == action_layer:
            h = jnp.concatenate((h, x2), axis=1)
        h = jnp.dot(h.astype(jnp.bfloat16), w.astype(jnp.bfloat16),
                    preferred_element_type=jnp.float32) + b
        h = jnp.maximum(h, 0.0)
    return h


if __name__ == "__main__":
    key = jax.random.PRNGKey(0)
    k_obs, k_act, k_params = jax.random.split(key, 3)

    primary = 32      # observation feature dim
    secondary = 8     # action feature dim
    layer_dims = (64, 64, 32)
    action_layer = 1  # concatenate x_2 before layer index 1

    body = Body(primary, secondary, layer_dims, action_layer, k_params)

    # Case 1: small RL batch -> single grid step.
    # Case 2: batch not a multiple of 8, large enough to split into 2 tiles
    #         (exercises padding + the multi-step "parallel" grid path).
    for batch in (8, 1030):
        kb_obs, kb_act = jax.random.split(jax.random.fold_in(k_obs, batch))
        x_1 = jax.random.normal(kb_obs, (batch, primary), jnp.float32)
        x_2 = jax.random.normal(kb_act, (batch, secondary), jnp.float32)

        out = jax.block_until_ready(body(x_1, x_2))
        assert out.shape == (batch, body.output_dim)

        # Tight check against a reference using the same bf16-operand pattern.
        ref_bf16 = _ref_forward_bf16(x_1, x_2, body.full_params, action_layer)
        assert jnp.allclose(out, ref_bf16, atol=1e-3, rtol=1e-3)

        # Loose semantic check against the original full-f32 forward.
        ref_f32 = _ref_forward_f32(x_1, x_2, body.full_params, action_layer)
        assert jnp.allclose(out, ref_f32, atol=0.25, rtol=0.0)

    print("KERNEL_OK")
</pallas_src>

<mosaic_0001>
module attributes {stable_mosaic.version = 11 : i64} {
  func.func @kernel(%arg0: i32, %arg1: memref<8x32xf32, #tpu.memory_space<vmem>>, %arg2: memref<8x8xf32, #tpu.memory_space<vmem>>, %arg3: memref<168x64xf32, #tpu.memory_space<vmem>>, %arg4: memref<3x64xf32, #tpu.memory_space<vmem>>, %arg5: memref<8x32xf32, #tpu.memory_space<vmem>>) attributes {dimension_semantics = [#tpu.dimension_semantics<parallel>], iteration_bounds = array<i64: 1>, scalar_prefetch = 0 : i64, scratch_operands = 0 : i64, tpu.core_type = #tpu.core_type<tc>, window_params = [{transform_indices = @transform_0, window_bounds = array<i64: 8, 32>}, {transform_indices = @transform_1, window_bounds = array<i64: 8, 8>}, {pipeline_mode = #tpu.pipeline_mode<synchronous>, transform_indices = @transform_2, window_bounds = array<i64: 168, 64>}, {pipeline_mode = #tpu.pipeline_mode<synchronous>, transform_indices = @transform_3, window_bounds = array<i64: 3, 64>}, {transform_indices = @transform_4, window_bounds = array<i64: 8, 32>}]} {
    %c0 = arith.constant 0 : index
    %c0_0 = arith.constant 0 : index
    %0 = vector.load %arg1[%c0, %c0_0] : memref<8x32xf32, #tpu.memory_space<vmem>>, vector<8x32xf32>
    %1 = arith.truncf %0 : vector<8x32xf32> to vector<8x32xbf16>
    %c0_1 = arith.constant 0 : index
    %c0_2 = arith.constant 0 : index
    %2 = vector.load %arg2[%c0_1, %c0_2] : memref<8x8xf32, #tpu.memory_space<vmem>>, vector<8x8xf32>
    %3 = arith.truncf %2 : vector<8x8xf32> to vector<8x8xbf16>
    %c0_3 = arith.constant 0 : index
    %c0_4 = arith.constant 0 : index
    %4 = vector.load %arg3[%c0_3, %c0_4] : memref<168x64xf32, #tpu.memory_space<vmem>>, vector<168x64xf32>
    %c0_5 = arith.constant 0 : index
    %c0_6 = arith.constant 0 : index
    %5 = vector.load %arg4[%c0_5, %c0_6] : memref<3x64xf32, #tpu.memory_space<vmem>>, vector<3x64xf32>
    %6 = vector.extract_strided_slice %4 {offsets = [0, 0], sizes = [32, 64], strides = [1, 1]} : vector<168x64xf32> to vector<32x64xf32>
    %7 = arith.truncf %6 : vector<32x64xf32> to vector<32x64xbf16>
    %8 = vector.extract_strided_slice %4 {offsets = [32, 0], sizes = [64, 64], strides = [1, 1]} : vector<168x64xf32> to vector<64x64xf32>
    %9 = arith.truncf %8 : vector<64x64xf32> to vector<64x64xbf16>
    %10 = vector.extract_strided_slice %4 {offsets = [96, 0], sizes = [64, 32], strides = [1, 1]} : vector<168x64xf32> to vector<64x32xf32>
    %11 = arith.truncf %10 : vector<64x32xf32> to vector<64x32xbf16>
    %12 = vector.extract_strided_slice %4 {offsets = [160, 0], sizes = [8, 64], strides = [1, 1]} : vector<168x64xf32> to vector<8x64xf32>
    %13 = arith.truncf %12 : vector<8x64xf32> to vector<8x64xbf16>
    %cst = arith.constant dense<0.000000e+00> : vector<8x64xf32>
    %14 = tpu.matmul %1, %7, %cst {dimension_numbers = #tpu.dot_dimension_numbers<[1], [0], [0], [1], [0, 0, 1, 1], [], []>} : vector<8x32xbf16>, vector<32x64xbf16>, vector<8x64xf32> -> vector<8x64xf32>
    %15 = vector.extract_strided_slice %5 {offsets = [0, 0], sizes = [1, 64], strides = [1, 1]} : vector<3x64xf32> to vector<1x64xf32>
    %16 = vector.broadcast %15 : vector<1x64xf32> to vector<8x64xf32>
    %17 = arith.addf %14, %16 : vector<8x64xf32>
    %cst_7 = arith.constant 0.000000e+00 : f32
    %18 = vector.broadcast %cst_7 : f32 to vector<8x64xf32>
    %19 = arith.maximumf %17, %18 : vector<8x64xf32>
    %20 = arith.truncf %19 : vector<8x64xf32> to vector<8x64xbf16>
    %cst_8 = arith.constant dense<0.000000e+00> : vector<8x64xf32>
    %21 = tpu.matmul %20, %9, %cst_8 {dimension_numbers = #tpu.dot_dimension_numbers<[1], [0], [0], [1], [0, 0, 1, 1], [], []>} : vector<8x64xbf16>, vector<64x64xbf16>, vector<8x64xf32> -> vector<8x64xf32>
    %cst_9 = arith.constant dense<0.000000e+00> : vector<8x64xf32>
    %22 = tpu.matmul %3, %13, %cst_9 {dimension_numbers = #tpu.dot_dimension_numbers<[1], [0], [0], [1], [0, 0, 1, 1], [], []>} : vector<8x8xbf16>, vector<8x64xbf16>, vector<8x64xf32> -> vector<8x64xf32>
    %23 = arith.addf %21, %22 : vector<8x64xf32>
    %24 = vector.extract_strided_slice %5 {offsets = [1, 0], sizes = [1, 64], strides = [1, 1]} : vector<3x64xf32> to vector<1x64xf32>
    %25 = vector.broadcast %24 : vector<1x64xf32> to vector<8x64xf32>
    %26 = arith.addf %23, %25 : vector<8x64xf32>
    %cst_10 = arith.constant 0.000000e+00 : f32
    %27 = vector.broadcast %cst_10 : f32 to vector<8x64xf32>
    %28 = arith.maximumf %26, %27 : vector<8x64xf32>
    %29 = arith.truncf %28 : vector<8x64xf32> to vector<8x64xbf16>
    %cst_11 = arith.constant dense<0.000000e+00> : vector<8x32xf32>
    %30 = tpu.matmul %29, %11, %cst_11 {dimension_numbers = #tpu.dot_dimension_numbers<[1], [0], [0], [1], [0, 0, 1, 1], [], []>} : vector<8x64xbf16>, vector<64x32xbf16>, vector<8x32xf32> -> vector<8x32xf32>
    %31 = vector.extract_strided_slice %5 {offsets = [2, 0], sizes = [1, 32], strides = [1, 1]} : vector<3x64xf32> to vector<1x32xf32>
    %32 = vector.broadcast %31 : vector<1x32xf32> to vector<8x32xf32>
    %33 = arith.addf %30, %32 : vector<8x32xf32>
    %cst_12 = arith.constant 0.000000e+00 : f32
    %34 = vector.broadcast %cst_12 : f32 to vector<8x32xf32>
    %35 = arith.maximumf %33, %34 : vector<8x32xf32>
    %c0_13 = arith.constant 0 : index
    %c0_14 = arith.constant 0 : index
    %36 = vector.load %arg5[%c0_13, %c0_14] : memref<8x32xf32, #tpu.memory_space<vmem>>, vector<8x32xf32>
    tpu.vector_store %arg5[%c0_13, %c0_14], %35 {strides = array<i32>} : memref<8x32xf32, #tpu.memory_space<vmem>>, vector<8x32xf32>,
    return
  }
  func.func @transform_0(%arg0: i32) -> (i32, i32) {
    %c0_i32 = arith.constant 0 : i32
    %c0_i32_0 = arith.constant 0 : i32
    return %arg0, %c0_i32 : i32, i32
  }
  func.func @transform_1(%arg0: i32) -> (i32, i32) {
    %c0_i32 = arith.constant 0 : i32
    %c0_i32_0 = arith.constant 0 : i32
    return %arg0, %c0_i32 : i32, i32
  }
  func.func @transform_2(%arg0: i32) -> (i32, i32) {
    %c0_i32 = arith.constant 0 : i32
    %c0_i32_0 = arith.constant 0 : i32
    %c0_i32_1 = arith.constant 0 : i32
    return %c0_i32, %c0_i32_0 : i32, i32
  }
  func.func @transform_3(%arg0: i32) -> (i32, i32) {
    %c0_i32 = arith.constant 0 : i32
    %c0_i32_0 = arith.constant 0 : i32
    %c0_i32_1 = arith.constant 0 : i32
    return %c0_i32, %c0_i32_0 : i32, i32
  }
  func.func @transform_4(%arg0: i32) -> (i32, i32) {
    %c0_i32 = arith.constant 0 : i32
    %c0_i32_0 = arith.constant 0 : i32
    return %arg0, %c0_i32 : i32, i32
  }
}

</mosaic_0001>

<llo_original>
// kernel: fused_body_forward.1
$region0: #{fused_body_forward.1}
  #allocation0 [shape = 'u32[]', space=smem, size = 0x4, offset = 0x4, fixed_abs, tag = 'smem constant byte address 0x4 - core index']
  #allocation1 [shape = 'u32[144,128]{1,0:T(1,128)}', space=vmem, size = 0x12000, scoped, tag = 'internal scratch']
  %s0 = inlined_call_operand.vmem [shape: f32[8,32], index: 0, kind: input, shape index: {}]
  %s1 = inlined_call_operand.vmem [shape: f32[8,8], index: 1, kind: input, shape index: {}]
  %s2 = inlined_call_operand.vmem [shape: f32[168,64], index: 2, kind: input, shape index: {}]
  %s3 = inlined_call_operand.vmem [shape: f32[3,64], index: 3, kind: input, shape index: {}]
  %s4 = inlined_call_operand.hbm [shape: f32[8,32], index: 4, kind: output, shape index: {}]
  %s5 = sld [smem:[#allocation0]]
  $region26: #{fused_body_forward.1} parent=0
    _
  %s7 = ssub.s32 1, %s5
  %s8 = scalar_select 0, %s7, %s5
  $region1: #{fused_body_forward.1} parent=0
    #allocation2 [shape = 'u8[4096]{0}', space=vmem, size = 0x1000, scoped, tag = 'output window, operand 0, single buffered']
    #allocation3 [shape = 's32[1]{0}', space=sflag, size = 0x4, scoped, tag = 'scoped memory for fused_body_forward.1']
    %9 = vsyncpa [#allocation3], 0
    // Predicated region
    $region2: #{fused_body_forward.1} parent=1 // pred_check
      _
    $region3: #{fused_body_forward.1} parent=1 // pred_check_branch
      %11 = sbr.rel (0) target = $region5
    $region4: #{fused_body_forward.1} parent=1 // pred_region
      _
    $region5: #{fused_body_forward.1} parent=1 // pred_fallthru
      _
    // Predicated region
    $region6: #{fused_body_forward.1} parent=1 // pred_check
      _
    $region7: #{fused_body_forward.1} parent=1 // pred_check_branch
      %13 = sbr.rel (0) target = $region9
    $region8: #{fused_body_forward.1} parent=1 // pred_region
      _
    $region9: #{fused_body_forward.1} parent=1 // pred_fallthru
      _
    // Predicated region
    $region10: #{fused_body_forward.1} parent=1 // pred_check
      _
    $region11: #{fused_body_forward.1} parent=1 // pred_check_branch
      %15 = sbr.rel (0) target = $region13
    $region12: #{fused_body_forward.1} parent=1 // pred_region
      _
    $region13: #{fused_body_forward.1} parent=1 // pred_fallthru
      _
    // Predicated region
    $region14: #{fused_body_forward.1} parent=1 // pred_check
      _
    $region15: #{fused_body_forward.1} parent=1 // pred_check_branch
      %17 = sbr.rel (0) target = $region17
    $region16: #{fused_body_forward.1} parent=1 // pred_region
      _
    $region17: #{fused_body_forward.1} parent=1 // pred_fallthru
      _
    %v19 = vld [vmem:[%s0] sm:$0xff]
    %v20 = vpack.c.bf16 %v19, %v19
    %v21 = vld [vmem:[%s1] sm:$0xff]
    %v22 = vpack.c.bf16 %v21, %v21
    %v23 = vld [vmem:[%s2] sm:$0xff]
    %v24 = vld [vmem:[%s2 + $0x8] sm:$0xff]
    %v25 = vld [vmem:[%s2 + $0x10] sm:$0xff]
    %v26 = vld [vmem:[%s2 + $0x18] sm:$0xff]
    %v27 = vld [vmem:[%s2 + $0x20] sm:$0xff]
    %v28 = vld [vmem:[%s2 + $0x28] sm:$0xff]
    %v29 = vld [vmem:[%s2 + $0x30] sm:$0xff]
    %v30 = vld [vmem:[%s2 + $0x38] sm:$0xff]
    %v31 = vld [vmem:[%s2 + $0x40] sm:$0xff]
    %v32 = vld [vmem:[%s2 + $0x48] sm:$0xff]
    %v33 = vld [vmem:[%s2 + $0x50] sm:$0xff]
    %v34 = vld [vmem:[%s2 + $0x58] sm:$0xff]
    %v35 = vld [vmem:[%s2 + $0x60] sm:$0xff]
    %v36 = vld [vmem:[%s2 + $0x68] sm:$0xff]
    %v37 = vld [vmem:[%s2 + $0x70] sm:$0xff]
    %v38 = vld [vmem:[%s2 + $0x78] sm:$0xff]
    %v39 = vld [vmem:[%s2 + $0x80] sm:$0xff]
    %v40 = vld [vmem:[%s2 + $0x88] sm:$0xff]
    %v41 = vld [vmem:[%s2 + $0x90] sm:$0xff]
    %v42 = vld [vmem:[%s2 + $0x98] sm:$0xff]
    %v43 = vld [vmem:[%s2 + $0xa0] sm:$0xff]
    %v44 = vld [vmem:[%s3] sm:$0x7]
    %v45 = vpack.c.bf16 %v24, %v23
    %v46 = vpack.c.bf16 %v26, %v25
    %v47 = vpack.c.bf16 %v28, %v27
    %v48 = vpack.c.bf16 %v30, %v29
    %v49 = vpack.c.bf16 %v32, %v31
    %v50 = vpack.c.bf16 %v34, %v33
    %v51 = vpack.c.bf16 %v36, %v35
    %v52 = vpack.c.bf16 %v38, %v37
    %v53 = vpack.c.bf16 %v40, %v39
    %v54 = vpack.c.bf16 %v42, %v41
    %v55 = vpack.c.bf16 %v43, %v43
    %v56 = vlaneseq
    %v57 = vshrl.u32 %v56, 7
    %v58 = vsub.s32 0, %v57
    %v59 = vrot.slane %v44, %v58
    %vm60 = vcmask 261120
    %v62 = vsel %vm60, %v20, 0
    %64 = vmatprep.subr.bf16.mxu0 0
    %65 = vmatpush1.bf16.msra.mxu0 %v45
    %66 = vmatprep.subr.bf16.mxu0 0
    %67 = vmatpush1.bf16.msra.mxu0 %v46
    %68 = vmatprep.subr.bf16.mxu0 0
    %69 = vmatpush1.bf16.msra.mxu0 0
    %70 = vmatprep.subr.bf16.mxu0 0
    %71 = vmatpush1.bf16.msra.mxu0 0
    %72 = vmatprep.subr.bf16.mxu0 0
    %73 = vmatpush1.bf16.msra.mxu0 0
    %74 = vmatprep.subr.bf16.mxu0 0
    %75 = vmatpush1.bf16.msra.mxu0 0
    %76 = vmatprep.subr.bf16.mxu0 0
    %77 = vmatpush1.bf16.msra.mxu0 0
    %78 = vmatprep.subr.bf16.mxu0 0
    %79 = vmatpush1.bf16.msra.mxu0 0
    %80 = vmatprep.subr.bf16.mxu0 0
    %81 = vmatpush1.bf16.msra.mxu0 0
    %82 = vmatprep.subr.bf16.mxu0 0
    %83 = vmatpush1.bf16.msra.mxu0 0
    %84 = vmatprep.subr.bf16.mxu0 0
    %85 = vmatpush1.bf16.msra.mxu0 0
    %86 = vmatprep.subr.bf16.mxu0 0
    %87 = vmatpush1.bf16.msra.mxu0 0
    %88 = vmatprep.subr.bf16.mxu0 0
    %89 = vmatpush1.bf16.msra.mxu0 0
    %90 = vmatprep.subr.bf16.mxu0 0
    %91 = vmatpush1.bf16.msra.mxu0 0
    %92 = vmatprep.subr.bf16.mxu0 0
    %93 = vmatpush1.bf16.msra.mxu0 0
    %94 = vmatprep.subr.bf16.mxu0 0
    %95 = vmatpush1.bf16.msra.mxu0 0
    %96 = vmatprep.mubr.bf16.mxu0 0
    %97 = vmatmul.mubr.bf16.gmra.mrb[0].mxu0 %v62
    %v98 = vpop.f32.mrb[0].mxu0
    %v99 = vadd.f32 %v59, %v98
    %v100 = vpop.f32.mrb[0].mxu0
    %v101 = vpop.f32.mrb[0].mxu0
    %v102 = vpop.f32.mrb[0].mxu0
    %103 = vdwg.mxu0
    %v104 = vmax.f32 %v99, 0.0
    %v105 = vpack.c.bf16 %v104, %v104
    %vm106 = vcmask 64512
    %v108 = vsel %vm106, %v22, 0
    %vm110 = vcmask 1043456
    %v112 = vsel %vm110, %v55, 0
    %114 = vmatprep.subr.bf16.mxu0 0
    %115 = vmatpush1.bf16.msra.mxu0 %v112
    %116 = vmatprep.subr.bf16.mxu0 0
    %117 = vmatpush1.bf16.msra.mxu0 0
    %118 = vmatprep.subr.bf16.mxu0 0
    %119 = vmatpush1.bf16.msra.mxu0 0
    %120 = vmatprep.subr.bf16.mxu0 0
    %121 = vmatpush1.bf16.msra.mxu0 0
    %122 = vmatprep.subr.bf16.mxu0 0
    %123 = vmatpush1.bf16.msra.mxu0 0
    %124 = vmatprep.subr.bf16.mxu0 0
    %125 = vmatpush1.bf16.msra.mxu0 0
    %126 = vmatprep.subr.bf16.mxu0 0
    %127 = vmatpush1.bf16.msra.mxu0 0
    %128 = vmatprep.subr.bf16.mxu0 0
    %129 = vmatpush1.bf16.msra.mxu0 0
    %130 = vmatprep.subr.bf16.mxu0 0
    %131 = vmatpush1.bf16.msra.mxu0 0
    %132 = vmatprep.subr.bf16.mxu0 0
    %133 = vmatpush1.bf16.msra.mxu0 0
    %134 = vmatprep.subr.bf16.mxu0 0
    %135 = vmatpush1.bf16.msra.mxu0 0
    %136 = vmatprep.subr.bf16.mxu0 0
    %137 = vmatpush1.bf16.msra.mxu0 0
    %138 = vmatprep.subr.bf16.mxu0 0
    %139 = vmatpush1.bf16.msra.mxu0 0
    %140 = vmatprep.subr.bf16.mxu0 0
    %141 = vmatpush1.bf16.msra.mxu0 0
    %142 = vmatprep.subr.bf16.mxu0 0
    %143 = vmatpush1.bf16.msra.mxu0 0
    %144 = vmatprep.subr.bf16.mxu0 0
    %145 = vmatpush1.bf16.msra.mxu0 0
    %146 = vmatprep.mubr.bf16.mxu0 0
    %147 = vmatmul.mubr.bf16.gmra.mrb[0].mxu0 %v108
    %v148 = vpop.f32.mrb[0].mxu0
    %v149 = vadd.f32 0.0, %v148
    %v150 = vpop.f32.mrb[0].mxu0
    %v151 = vpop.f32.mrb[0].mxu0
    %v152 = vpop.f32.mrb[0].mxu0
    %153 = vdwg.mxu0
    %vm154 = vcmask 523264
    %v156 = vsel %vm154, %v105, 0
    %158 = vmatprep.subr.bf16.mxu0 0
    %159 = vmatpush1.bf16.msra.mxu0 %v47
    %160 = vmatprep.subr.bf16.mxu0 0
    %161 = vmatpush1.bf16.msra.mxu0 %v48
    %162 = vmatprep.subr.bf16.mxu0 0
    %163 = vmatpush1.bf16.msra.mxu0 %v49
    %164 = vmatprep.subr.bf16.mxu0 0
    %165 = vmatpush1.bf16.msra.mxu0 %v50
    %166 = vmatprep.subr.bf16.mxu0 0
    %167 = vmatpush1.bf16.msra.mxu0 0
    %168 = vmatprep.subr.bf16.mxu0 0
    %169 = vmatpush1.bf16.msra.mxu0 0
    %170 = vmatprep.subr.bf16.mxu0 0
    %171 = vmatpush1.bf16.msra.mxu0 0
    %172 = vmatprep.subr.bf16.mxu0 0
    %173 = vmatpush1.bf16.msra.mxu0 0
    %174 = vmatprep.subr.bf16.mxu0 0
    %175 = vmatpush1.bf16.msra.mxu0 0
    %176 = vmatprep.subr.bf16.mxu0 0
    %177 = vmatpush1.bf16.msra.mxu0 0
    %178 = vmatprep.subr.bf16.mxu0 0
    %179 = vmatpush1.bf16.msra.mxu0 0
    %180 = vmatprep.subr.bf16.mxu0 0
    %181 = vmatpush1.bf16.msra.mxu0 0
    %182 = vmatprep.subr.bf16.mxu0 0
    %183 = vmatpush1.bf16.msra.mxu0 0
    %184 = vmatprep.subr.bf16.mxu0 0
    %185 = vmatpush1.bf16.msra.mxu0 0
    %186 = vmatprep.subr.bf16.mxu0 0
    %187 = vmatpush1.bf16.msra.mxu0 0
    %188 = vmatprep.subr.bf16.mxu0 0
    %189 = vmatpush1.bf16.msra.mxu0 0
    %190 = vmatprep.mubr.bf16.mxu0 0
    %191 = vmatmul.mubr.bf16.gmra.mrb[0].mxu0 %v156
    %v192 = vpop.f32.mrb[0].mxu0
    %v193 = vadd.f32 %v149, %v192
    %v194 = vpop.f32.mrb[0].mxu0
    %v195 = vpop.f32.mrb[0].mxu0
    %v196 = vpop.f32.mrb[0].mxu0
    %197 = vdwg.mxu0
    %v198 = vlaneseq
    %v199 = vshrl.u32 %v198, 7
    %v200 = vsub.s32 1, %v199
    %v201 = vrot.slane %v44, %v200
    %v202 = vadd.f32 %v193, %v201
    %v203 = vmax.f32 %v202, 0.0
    %v204 = vpack.c.bf16 %v203, %v203
    %v205 = vlaneseq
    %v206 = vshrl.u32 %v205, 7
    %v207 = vsub.s32 2, %v206
    %v208 = vrot.slane %v44, %v207
    %v210 = vsel %vm154, %v204, 0
    %212 = vmatprep.subr.bf16.mxu0 0
    %213 = vmatpush1.bf16.msra.mxu0 %v51
    %214 = vmatprep.subr.bf16.mxu0 0
    %215 = vmatpush1.bf16.msra.mxu0 %v52
    %216 = vmatprep.subr.bf16.mxu0 0
    %217 = vmatpush1.bf16.msra.mxu0 %v53
    %218 = vmatprep.subr.bf16.mxu0 0
    %219 = vmatpush1.bf16.msra.mxu0 %v54
    %220 = vmatprep.subr.bf16.mxu0 0
    %221 = vmatpush1.bf16.msra.mxu0 0
    %222 = vmatprep.subr.bf16.mxu0 0
    %223 = vmatpush1.bf16.msra.mxu0 0
    %224 = vmatprep.subr.bf16.mxu0 0
    %225 = vmatpush1.bf16.msra.mxu0 0
    %226 = vmatprep.subr.bf16.mxu0 0
    %227 = vmatpush1.bf16.msra.mxu0 0
    %228 = vmatprep.subr.bf16.mxu0 0
    %229 = vmatpush1.bf16.msra.mxu0 0
    %230 = vmatprep.subr.bf16.mxu0 0
    %231 = vmatpush1.bf16.msra.mxu0 0
    %232 = vmatprep.subr.bf16.mxu0 0
    %233 = vmatpush1.bf16.msra.mxu0 0
    %234 = vmatprep.subr.bf16.mxu0 0
    %235 = vmatpush1.bf16.msra.mxu0 0
    %236 = vmatprep.subr.bf16.mxu0 0
    %237 = vmatpush1.bf16.msra.mxu0 0
    %238 = vmatprep.subr.bf16.mxu0 0
    %239 = vmatpush1.bf16.msra.mxu0 0
    %240 = vmatprep.subr.bf16.mxu0 0
    %241 = vmatpush1.bf16.msra.mxu0 0
    %242 = vmatprep.subr.bf16.mxu0 0
    %243 = vmatpush1.bf16.msra.mxu0 0
    %244 = vmatprep.mubr.bf16.mxu0 0
    %245 = vmatmul.mubr.bf16.gmra.mrb[0].mxu0 %v210
    %v246 = vpop.f32.mrb[0].mxu0
    %v247 = vadd.f32 %v208, %v246
    %v248 = vpop.f32.mrb[0].mxu0
    %v249 = vpop.f32.mrb[0].mxu0
    %v250 = vpop.f32.mrb[0].mxu0
    %251 = vdwg.mxu0
    %v252 = vmax.f32 %v247, 0.0
    %253 = vst.msk [vmem:[#allocation2] sm:$0xff] %vm60, %v252
    // Predicated region
    $region18: #{fused_body_forward.1} parent=1 // pred_check
      _
    $region19: #{fused_body_forward.1} parent=1 // pred_check_branch
      %255 = sbr.rel (0) target = $region21
    $region20: #{fused_body_forward.1} parent=1 // pred_region
      %s257 = ssub.s32 128, 128
      %258 = vsyncadd [#allocation3], %s257
      %s260 = sshll.u32 [#allocation2], 4
      %s261 = int_to_ptr.vmem [resolvable:$true] %s260
      %263 = dma.vmem_to_hbm [thread:$0]  %s261, 128, %s4, [#allocation3]
    $region21: #{fused_body_forward.1} parent=1 // pred_fallthru
      _
    // Predicated region
    $region22: #{fused_body_forward.1} parent=1 // pred_check
      _
    $region23: #{fused_body_forward.1} parent=1 // pred_check_branch
      %265 = sbr.rel (0) target = $region25
    $region24: #{fused_body_forward.1} parent=1 // pred_region
      %266 = dma.done [#allocation3], 128
    $region25: #{fused_body_forward.1} parent=1 // pred_fallthru
      _
    %267 = vsyncpa [#allocation3], 1

</llo_original>
